<compile_context>
chip_gen: v7x
topology: tpu7x:2x2x1
jax: 0.10.0
libtpu: 0.0.40
codegen_flags: <defaults>
</compile_context>

<pallas_src>
import functools

import jax
import jax.numpy as jnp
from jax.experimental import pallas as pl
from jax.experimental.pallas import tpu as pltpu


LANE = 1024                # lane-dense last dim (multiple of 128)
DEFAULT_BLOCK_ROWS = 512   # (512, 1024) f32 block = 2 MiB per buffer


def _scale_bias_kernel(x_ref, w_ref, b_ref, o_ref):
    # y = x * W[0, 0] + b[0]   (exact semantics of nn.Linear(1, 1))
    # w_ref / b_ref live in SMEM -> cheap scalar reads; the multiply-add is a
    # full-vreg VPU op on a lane-dense tile.
    o_ref[...] = x_ref[...] * w_ref[0, 0] + b_ref[0, 0]


@functools.partial(jax.jit, static_argnames=("block_rows",))
def simple_model_forward(x, w, b, *, block_rows=DEFAULT_BLOCK_ROWS):
    """x: (N, 1), w: (1, 1), b: (1,) -> (N, 1).  Matches nn.Linear(1, 1)."""
    N, f_in = x.shape
    assert f_in == 1 and w.shape == (1, 1) and b.shape == (1,)
    dtype = x.dtype

    # Lane-dense layout: flatten (N, 1) -> 1D, pad to a whole number of
    # (block_rows, LANE) tiles, and view as a 2D slab.
    rows_needed = pl.cdiv(N, LANE)
    br = min(block_rows, ((rows_needed + 7) // 8) * 8)  # sublane multiple of 8
    padded_rows = br * pl.cdiv(rows_needed, br)
    padded_len = padded_rows * LANE

    flat = x.reshape(-1)
    if padded_len != N:
        flat = jnp.pad(flat, (0, padded_len - N))
    x2d = flat.reshape(padded_rows, LANE)

    grid = (padded_rows // br,)

    y2d = pl.pallas_call(
        _scale_bias_kernel,
        out_shape=jax.ShapeDtypeStruct((padded_rows, LANE), dtype),
        grid=grid,
        in_specs=[
            pl.BlockSpec((br, LANE), lambda i: (i, 0)),
            pl.BlockSpec(memory_space=pltpu.MemorySpace.SMEM),  # w (1,1)
            pl.BlockSpec(memory_space=pltpu.MemorySpace.SMEM),  # b (1,1)
        ],
        out_specs=pl.BlockSpec((br, LANE), lambda i: (i, 0)),
        compiler_params=pltpu.CompilerParams(
            dimension_semantics=("parallel",),
        ),
    )(x2d, w, b.reshape(1, 1))

    # Drop padding and restore the (N, 1) PyTorch layout.
    return y2d.reshape(-1)[:N].reshape(N, 1)


if __name__ == "__main__":
    key = jax.random.PRNGKey(0)
    kx, kw, kb, kx2 = jax.random.split(key, 4)

    # Deterministic parameters (mimics nn.Linear uniform(-1/sqrt(fan_in), +)).
    bound = 1.0  # 1/sqrt(1)
    w = jax.random.uniform(kw, (1, 1), jnp.float32, minval=-bound, maxval=bound)
    b = jax.random.uniform(kb, (1,), jnp.float32, minval=-bound, maxval=bound)

    # Small shape consistent with the module: batch of 8 rows, 1 feature.
    x = jax.random.normal(kx, (8, 1), dtype=jnp.float32)
    y = jax.block_until_ready(simple_model_forward(x, w, b))
    y_ref = x @ w.T + b
    assert y.shape == (8, 1)
    assert jnp.allclose(y, y_ref, atol=1e-6, rtol=1e-6)

    # Second check: exercises the multi-block grid and the pad/slice path
    # (non-multiple-of-LANE length, block_rows=8 -> grid of 5 steps).
    x2 = jax.random.normal(kx2, (40000, 1), dtype=jnp.float32)
    y2 = jax.block_until_ready(simple_model_forward(x2, w, b, block_rows=8))
    y2_ref = x2 @ w.T + b
    assert y2.shape == (40000, 1)
    assert jnp.allclose(y2, y2_ref, atol=1e-6, rtol=1e-6)

    print("KERNEL_OK")
</pallas_src>

<mosaic_0001>
module attributes {stable_mosaic.version = 11 : i64} {
  func.func @_scale_bias_kernel(%arg0: i32, %arg1: memref<8x1024xf32, #tpu.memory_space<vmem>>, %arg2: memref<1x1xf32, #tpu.memory_space<smem>>, %arg3: memref<1x1xf32, #tpu.memory_space<smem>>, %arg4: memref<8x1024xf32, #tpu.memory_space<vmem>>) attributes {dimension_semantics = [#tpu.dimension_semantics<parallel>], iteration_bounds = array<i64: 1>, scalar_prefetch = 0 : i64, scratch_operands = 0 : i64, tpu.core_type = #tpu.core_type<tc>, window_params = [{transform_indices = @transform_0, window_bounds = array<i64: 8, 1024>}, {transform_indices = @transform_1, window_bounds = array<i64: 1, 1>}, {transform_indices = @transform_2, window_bounds = array<i64: 1, 1>}, {transform_indices = @transform_3, window_bounds = array<i64: 8, 1024>}]} {
    %c0 = arith.constant 0 : index
    %c0_0 = arith.constant 0 : index
    %0 = vector.load %arg1[%c0, %c0_0] : memref<8x1024xf32, #tpu.memory_space<vmem>>, vector<8x1024xf32>
    %c0_1 = arith.constant 0 : index
    %c0_2 = arith.constant 0 : index
    %1 = memref.load %arg2[%c0_1, %c0_2] : memref<1x1xf32, #tpu.memory_space<smem>>
    %2 = vector.broadcast %1 : f32 to vector<8x1024xf32>
    %3 = arith.mulf %0, %2 : vector<8x1024xf32>
    %c0_3 = arith.constant 0 : index
    %c0_4 = arith.constant 0 : index
    %4 = memref.load %arg3[%c0_3, %c0_4] : memref<1x1xf32, #tpu.memory_space<smem>>
    %5 = vector.broadcast %4 : f32 to vector<8x1024xf32>
    %6 = arith.addf %3, %5 : vector<8x1024xf32>
    %c0_5 = arith.constant 0 : index
    %c0_6 = arith.constant 0 : index
    %7 = vector.load %arg4[%c0_5, %c0_6] : memref<8x1024xf32, #tpu.memory_space<vmem>>, vector<8x1024xf32>
    tpu.vector_store %arg4[%c0_5, %c0_6], %6 {strides = array<i32>} : memref<8x1024xf32, #tpu.memory_space<vmem>>, vector<8x1024xf32>,
    return
  }
  func.func @transform_0(%arg0: i32) -> (i32, i32) {
    %c0_i32 = arith.constant 0 : i32
    %c0_i32_0 = arith.constant 0 : i32
    return %arg0, %c0_i32 : i32, i32
  }
  func.func @transform_1(%arg0: i32) -> (i32, i32) {
    %c0_i32 = arith.constant 0 : i32
    %c0_i32_0 = arith.constant 0 : i32
    %c0_i32_1 = arith.constant 0 : i32
    return %c0_i32, %c0_i32_0 : i32, i32
  }
  func.func @transform_2(%arg0: i32) -> (i32, i32) {
    %c0_i32 = arith.constant 0 : i32
    %c0_i32_0 = arith.constant 0 : i32
    %c0_i32_1 = arith.constant 0 : i32
    return %c0_i32, %c0_i32_0 : i32, i32
  }
  func.func @transform_3(%arg0: i32) -> (i32, i32) {
    %c0_i32 = arith.constant 0 : i32
    %c0_i32_0 = arith.constant 0 : i32
    return %arg0, %c0_i32 : i32, i32
  }
}

</mosaic_0001>

<llo_original>
// kernel: simple_model_forward.1
$region0: #{simple_model_forward.1}
  #allocation0 [shape = 'u32[]', space=smem, size = 0x4, offset = 0x4, fixed_abs, tag = 'smem constant byte address 0x4 - core index']
  #allocation1 [shape = 'u32[144,128]{1,0:T(1,128)}', space=vmem, size = 0x12000, scoped, tag = 'internal scratch']
  #allocation2 [shape = 'f32[1,1]{1,0:T(1,128)S(6)}', space=smem, size = 0x200, scoped, tag = 'scoped memory for simple_model_forward.1']
  #allocation3 [shape = 'f32[1,1]{1,0:T(1,128)S(6)}', space=smem, size = 0x200, scoped, tag = 'scoped memory for simple_model_forward.1']
  %s0 = inlined_call_operand.vmem [shape: f32[8,1024], index: 0, kind: input, shape index: {}]
  %s1 = inlined_call_operand.<no memory space> [shape: f32[1,1], index: 1, kind: input, shape index: {}]
  %s2 = inlined_call_operand.<no memory space> [shape: f32[1,1], index: 2, kind: input, shape index: {}]
  %s3 = inlined_call_operand.vmem [shape: f32[8,1024], index: 3, kind: output, shape index: {}]
  %s4 = sld [smem:[#allocation0]]
  $region22: #{simple_model_forward.1} parent=0
    _
  %s6 = ssub.s32 1, %s4
  %s7 = scalar_select 0, %s6, %s4
  %8 = sst [smem:[#allocation2]] %s1
  %9 = sst [smem:[#allocation3]] %s2
  // Predicated region
  $region2: #{simple_model_forward.1} parent=0 // pred_check
    _
  $region3: #{simple_model_forward.1} parent=0 // pred_check_branch
    %11 = sbr.rel (0) target = $region5
  $region4: #{simple_model_forward.1} parent=0 // pred_region
    _
  $region5: #{simple_model_forward.1} parent=0 // pred_fallthru
    _
  // Predicated region
  $region6: #{simple_model_forward.1} parent=0 // pred_check
    _
  $region7: #{simple_model_forward.1} parent=0 // pred_check_branch
    %13 = sbr.rel (0) target = $region9
  $region8: #{simple_model_forward.1} parent=0 // pred_region
    _
  $region9: #{simple_model_forward.1} parent=0 // pred_fallthru
    _
  // Predicated region
  $region10: #{simple_model_forward.1} parent=0 // pred_check
    _
  $region11: #{simple_model_forward.1} parent=0 // pred_check_branch
    %15 = sbr.rel (0) target = $region13
  $region12: #{simple_model_forward.1} parent=0 // pred_region
    _
  $region13: #{simple_model_forward.1} parent=0 // pred_fallthru
    _
  %v16 = vld [vmem:[%s0] sm:$0xff]
  %v17 = vld [vmem:[%s0 + $0x8] sm:$0xff]
  %v18 = vld [vmem:[%s0 + $0x10] sm:$0xff]
  %v19 = vld [vmem:[%s0 + $0x18] sm:$0xff]
  %v20 = vld [vmem:[%s0 + $0x20] sm:$0xff]
  %v21 = vld [vmem:[%s0 + $0x28] sm:$0xff]
  %v22 = vld [vmem:[%s0 + $0x30] sm:$0xff]
  %v23 = vld [vmem:[%s0 + $0x38] sm:$0xff]
  %s24 = sld [smem:[#allocation2]]
  %v25 = vstv %s24
  %v26 = vmul.f32 %v16, %v25
  %v27 = vmul.f32 %v17, %v25
  %v28 = vmul.f32 %v18, %v25
  %v29 = vmul.f32 %v19, %v25
  %v30 = vmul.f32 %v20, %v25
  %v31 = vmul.f32 %v21, %v25
  %v32 = vmul.f32 %v22, %v25
  %v33 = vmul.f32 %v23, %v25
  %s34 = sld [smem:[#allocation3]]
  %v35 = vstv %s34
  %v36 = vadd.f32 %v26, %v35
  %v37 = vadd.f32 %v27, %v35
  %v38 = vadd.f32 %v28, %v35
  %v39 = vadd.f32 %v29, %v35
  %v40 = vadd.f32 %v30, %v35
  %v41 = vadd.f32 %v31, %v35
  %v42 = vadd.f32 %v32, %v35
  %v43 = vadd.f32 %v33, %v35
  %44 = vst [vmem:[%s3] sm:$0xff] %v36
  %45 = vst [vmem:[%s3 + $0x8] sm:$0xff] %v37
  %46 = vst [vmem:[%s3 + $0x10] sm:$0xff] %v38
  %47 = vst [vmem:[%s3 + $0x18] sm:$0xff] %v39
  %48 = vst [vmem:[%s3 + $0x20] sm:$0xff] %v40
  %49 = vst [vmem:[%s3 + $0x28] sm:$0xff] %v41
  %50 = vst [vmem:[%s3 + $0x30] sm:$0xff] %v42
  %51 = vst [vmem:[%s3 + $0x38] sm:$0xff] %v43
  // Predicated region
  $region14: #{simple_model_forward.1} parent=0 // pred_check
    _
  $region15: #{simple_model_forward.1} parent=0 // pred_check_branch
    %53 = sbr.rel (0) target = $region17
  $region16: #{simple_model_forward.1} parent=0 // pred_region
    _
  $region17: #{simple_model_forward.1} parent=0 // pred_fallthru
    _
  // Predicated region
  $region18: #{simple_model_forward.1} parent=0 // pred_check
    _
  $region19: #{simple_model_forward.1} parent=0 // pred_check_branch
    %55 = sbr.rel (0) target = $region21
  $region20: #{simple_model_forward.1} parent=0 // pred_region
    _
  $region21: #{simple_model_forward.1} parent=0 // pred_fallthru
    _

</llo_original>
